<compile_context>
chip_gen: v6e
topology: v6e:2x2x1
jax: 0.10.0
libtpu: 0.0.40
codegen_flags: <defaults>
</compile_context>

<pallas_src>
import functools

import jax
import jax.numpy as jnp
from jax.experimental import pallas as pl
from jax.experimental.pallas import tpu as pltpu

EPS = 1e-5


def _vmem_limit_bytes():
    """Per-generation VMEM budget (v7x: ~48 of 64 MiB; v5e/v6e: ~96 of 128 MiB)."""
    try:
        cap = int(pltpu.get_tpu_info().vmem_capacity_bytes)
    except Exception:
        return 64 << 20  # conservative fallback that compiles on every generation
    return min((cap * 3) // 4, 100 << 20)


def _pick_tile_n(din, dout, batch, w_itemsize, vmem_limit, max_tile_n):
    """Largest Dout tile (multiple of 128, divides dout) fitting the VMEM budget."""
    budget = int(vmem_limit * 0.8)  # headroom for Mosaic internal scratch
    for tn in (2048, 1024, 512, 256, 128):
        if tn > max_tile_n or dout % tn:
            continue
        need = (
            2 * din * tn * w_itemsize   # double-buffered weight column tiles
            + 2 * batch * tn * 4        # double-buffered f32 output tiles
            + 2 * batch * din * 4       # resident f32 activation block
            + 4 * 2 * tn * 4            # gamma / beta tiles
        )
        if need <= budget:
            return tn
    return dout  # tiny layer: single full-width tile


def _linear_bn_kernel(x_ref, w_ref, g_ref, beta_ref, o_ref, *, relu, inv_b):
    # Linear (no bias: it is cancelled exactly by the BN mean subtraction).
    # Matmul operands follow the stored weight dtype (bf16 recommended);
    # accumulation + all BatchNorm math stay in f32.
    y = jnp.dot(
        x_ref[...].astype(w_ref.dtype),
        w_ref[...],
        preferred_element_type=jnp.float32,
    )
    # Single-pass batch statistics (training-mode BN: biased variance).
    s1 = jnp.sum(y, axis=0, keepdims=True)
    s2 = jnp.sum(y * y, axis=0, keepdims=True)
    mean = s1 * inv_b
    var = jnp.maximum(s2 * inv_b - mean * mean, 0.0)
    # Fold gamma / rsqrt / beta / mean into one scale + shift.
    scale = jax.lax.rsqrt(var + EPS) * g_ref[...].astype(jnp.float32)
    shift = beta_ref[...].astype(jnp.float32) - mean * scale
    y = y * scale + shift
    if relu:
        y = jnp.maximum(y, 0.0)
    o_ref[...] = y.astype(o_ref.dtype)


def _linear_bn_layer(x, w, g, beta, *, relu, vmem_limit, max_tile_n):
    batch, din = x.shape
    dout = w.shape[1]
    tn = _pick_tile_n(din, dout, batch, jnp.dtype(w.dtype).itemsize,
                      vmem_limit, max_tile_n)
    grid = (dout // tn,)

    kernel = functools.partial(_linear_bn_kernel, relu=relu, inv_b=1.0 / batch)
    return pl.pallas_call(
        kernel,
        out_shape=jax.ShapeDtypeStruct((batch, dout), jnp.float32),
        grid=grid,
        in_specs=[
            # Full-batch activation block, constant index -> fetched once, resident.
            pl.BlockSpec((batch, din), lambda j: (0, 0)),
            # Weight column tiles streamed (double-buffered) across the grid.
            pl.BlockSpec((din, tn), lambda j: (0, j)),
            pl.BlockSpec((1, tn), lambda j: (0, j)),
            pl.BlockSpec((1, tn), lambda j: (0, j)),
        ],
        out_specs=pl.BlockSpec((batch, tn), lambda j: (0, j)),
        compiler_params=pltpu.CompilerParams(
            dimension_semantics=("parallel",),  # v7x: shard Dout tiles across both TCs
            vmem_limit_bytes=vmem_limit,
        ),
    )(x, w, g, beta)


def expander_forward(x, params, *, max_tile_n=1024):
    """x: (B, input_dim) float32. Weights pre-transposed to (in, out); bf16 ok."""
    vmem_limit = _vmem_limit_bytes()
    kw = dict(vmem_limit=vmem_limit, max_tile_n=max_tile_n)
    h = _linear_bn_layer(x, params["w1"], params["g1"], params["beta1"], relu=True, **kw)
    h = _linear_bn_layer(h, params["w2"], params["g2"], params["beta2"], relu=True, **kw)
    return _linear_bn_layer(h, params["w3"], params["g3"], params["beta3"], relu=False, **kw)


def init_params(key, input_dim, hidden_dim, output_dim):
    """Deterministic synthetic init. Linear weights stored as (in, out)."""
    ks = jax.random.split(key, 6)

    def lin(kw_, kb_, din, dout):
        bound = 1.0 / jnp.sqrt(jnp.float32(din))
        w = jax.random.uniform(kw_, (din, dout), jnp.float32, -bound, bound)
        b = jax.random.uniform(kb_, (1, dout), jnp.float32, -bound, bound)
        return w, b

    w1, b1 = lin(ks[0], ks[1], input_dim, hidden_dim)
    w2, b2 = lin(ks[2], ks[3], hidden_dim, hidden_dim)
    w3, b3 = lin(ks[4], ks[5], hidden_dim, output_dim)

    ones = lambda d: jnp.ones((1, d), jnp.float32)
    zeros = lambda d: jnp.zeros((1, d), jnp.float32)

    # Linear biases are kept for the reference only; the kernel omits them
    # because training-mode BN cancels any pre-BN per-feature constant.
    return dict(
        w1=w1, b1=b1, g1=ones(hidden_dim), beta1=zeros(hidden_dim),
        w2=w2, b2=b2, g2=ones(hidden_dim), beta2=zeros(hidden_dim),
        w3=w3, b3=b3, g3=ones(output_dim), beta3=zeros(output_dim),
    )


def expander_ref(x, p):
    """Pure-JAX reference matching PyTorch training-mode forward (bias included;
    matmul operands cast to the stored weight dtype, f32 accumulation)."""
    def block(h, w, b, g, be, relu):
        y = jnp.dot(h.astype(w.dtype), w, preferred_element_type=jnp.float32) + b
        m = jnp.mean(y, axis=0, keepdims=True)
        v = jnp.mean((y - m) ** 2, axis=0, keepdims=True)
        y = (y - m) / jnp.sqrt(v + EPS) * g + be
        return jnp.maximum(y, 0.0) if relu else y

    h = block(x, p["w1"], p["b1"], p["g1"], p["beta1"], True)
    h = block(h, p["w2"], p["b2"], p["g2"], p["beta2"], True)
    return block(h, p["w3"], p["b3"], p["g3"], p["beta3"], False)


if __name__ == "__main__":
    # Small shapes consistent with the module (Linear -> BN1d stack on (B, D));
    # B=128 fills the MXU M dimension.  max_tile_n=256 forces a multi-tile grid
    # so the streamed-weight / tiled-output path is actually exercised.
    B, input_dim, hidden_dim, output_dim = 128, 256, 512, 512

    key = jax.random.PRNGKey(0)
    kx, kp = jax.random.split(key)
    x = jax.random.normal(kx, (B, input_dim), jnp.float32)
    params_f32 = init_params(kp, input_dim, hidden_dim, output_dim)

    # Strict correctness gate: f32 weights end-to-end.
    out = jax.block_until_ready(expander_forward(x, params_f32, max_tile_n=256))
    ref = expander_ref(x, params_f32)
    assert out.shape == (B, output_dim), out.shape
    err = float(jnp.max(jnp.abs(out - ref)))
    assert err < 1e-4, err

    # Recommended fast path (v6e/v7x): bf16 MXU operands, f32 accumulation.
    # Looser tolerance: both sides use bf16 operands, residual diffs come only
    # from accumulation order / rounding-boundary effects across layers.
    params_bf16 = {
        k: (v.astype(jnp.bfloat16) if k.startswith("w") else v)
        for k, v in params_f32.items()
    }
    out_bf = jax.block_until_ready(expander_forward(x, params_bf16, max_tile_n=256))
    ref_bf = expander_ref(x, params_bf16)
    err_bf = float(jnp.max(jnp.abs(out_bf - ref_bf)))
    assert err_bf < 1e-2, err_bf

    print("KERNEL_OK")
</pallas_src>

<mosaic_0001>
module attributes {stable_mosaic.version = 11 : i64} {
  func.func @_linear_bn_kernel(%arg0: i32, %arg1: memref<128x256xf32, #tpu.memory_space<vmem>>, %arg2: memref<256x256xf32, #tpu.memory_space<vmem>>, %arg3: memref<1x256xf32, #tpu.memory_space<vmem>>, %arg4: memref<1x256xf32, #tpu.memory_space<vmem>>, %arg5: memref<128x256xf32, #tpu.memory_space<vmem>>) attributes {dimension_semantics = [#tpu.dimension_semantics<parallel>], iteration_bounds = array<i64: 2>, scalar_prefetch = 0 : i64, scratch_operands = 0 : i64, tpu.core_type = #tpu.core_type<tc>, window_params = [{pipeline_mode = #tpu.pipeline_mode<synchronous>, transform_indices = @transform_0, window_bounds = array<i64: 128, 256>}, {transform_indices = @transform_1, window_bounds = array<i64: 256, 256>}, {transform_indices = @transform_2, window_bounds = array<i64: 1, 256>}, {transform_indices = @transform_3, window_bounds = array<i64: 1, 256>}, {transform_indices = @transform_4, window_bounds = array<i64: 128, 256>}]} {
    %c0 = arith.constant 0 : index
    %c0_0 = arith.constant 0 : index
    %0 = vector.load %arg1[%c0, %c0_0] : memref<128x256xf32, #tpu.memory_space<vmem>>, vector<128x256xf32>
    %c0_1 = arith.constant 0 : index
    %c0_2 = arith.constant 0 : index
    %1 = vector.load %arg2[%c0_1, %c0_2] : memref<256x256xf32, #tpu.memory_space<vmem>>, vector<256x256xf32>
    %cst = arith.constant dense<0.000000e+00> : vector<128x256xf32>
    %2 = tpu.matmul %0, %1, %cst {dimension_numbers = #tpu.dot_dimension_numbers<[1], [0], [0], [1], [0, 0, 1, 1], [], []>} : vector<128x256xf32>, vector<256x256xf32>, vector<128x256xf32> -> vector<128x256xf32>
    %cst_3 = arith.constant dense<0.000000e+00> : vector<256xf32>
    %3 = vector.multi_reduction <add>, %2, %cst_3 [0] : vector<128x256xf32> to vector<256xf32>
    %4 = vector.shape_cast %3 : vector<256xf32> to vector<1x256xf32>
    %5 = arith.mulf %2, %2 : vector<128x256xf32>
    %cst_4 = arith.constant dense<0.000000e+00> : vector<256xf32>
    %6 = vector.multi_reduction <add>, %5, %cst_4 [0] : vector<128x256xf32> to vector<256xf32>
    %7 = vector.shape_cast %6 : vector<256xf32> to vector<1x256xf32>
    %cst_5 = arith.constant 7.812500e-03 : f32
    %8 = vector.broadcast %cst_5 : f32 to vector<1x256xf32>
    %9 = arith.mulf %4, %8 : vector<1x256xf32>
    %cst_6 = arith.constant 7.812500e-03 : f32
    %10 = vector.broadcast %cst_6 : f32 to vector<1x256xf32>
    %11 = arith.mulf %7, %10 : vector<1x256xf32>
    %12 = arith.mulf %9, %9 : vector<1x256xf32>
    %13 = arith.subf %11, %12 : vector<1x256xf32>
    %cst_7 = arith.constant 0.000000e+00 : f32
    %14 = vector.broadcast %cst_7 : f32 to vector<1x256xf32>
    %15 = arith.maximumf %13, %14 : vector<1x256xf32>
    %cst_8 = arith.constant 9.99999974E-6 : f32
    %16 = vector.broadcast %cst_8 : f32 to vector<1x256xf32>
    %17 = arith.addf %15, %16 : vector<1x256xf32>
    %18 = math.rsqrt %17 : vector<1x256xf32>
    %c0_9 = arith.constant 0 : index
    %c0_10 = arith.constant 0 : index
    %19 = vector.load %arg3[%c0_9, %c0_10] : memref<1x256xf32, #tpu.memory_space<vmem>>, vector<1x256xf32>
    %20 = arith.mulf %18, %19 : vector<1x256xf32>
    %c0_11 = arith.constant 0 : index
    %c0_12 = arith.constant 0 : index
    %21 = vector.load %arg4[%c0_11, %c0_12] : memref<1x256xf32, #tpu.memory_space<vmem>>, vector<1x256xf32>
    %22 = arith.mulf %9, %20 : vector<1x256xf32>
    %23 = arith.subf %21, %22 : vector<1x256xf32>
    %24 = vector.broadcast %20 : vector<1x256xf32> to vector<128x256xf32>
    %25 = arith.mulf %2, %24 : vector<128x256xf32>
    %26 = vector.broadcast %23 : vector<1x256xf32> to vector<128x256xf32>
    %27 = arith.addf %25, %26 : vector<128x256xf32>
    %cst_13 = arith.constant 0.000000e+00 : f32
    %28 = vector.broadcast %cst_13 : f32 to vector<128x256xf32>
    %29 = arith.maximumf %27, %28 : vector<128x256xf32>
    %c0_14 = arith.constant 0 : index
    %c0_15 = arith.constant 0 : index
    %30 = vector.load %arg5[%c0_14, %c0_15] : memref<128x256xf32, #tpu.memory_space<vmem>>, vector<128x256xf32>
    tpu.vector_store %arg5[%c0_14, %c0_15], %29 {strides = array<i32>} : memref<128x256xf32, #tpu.memory_space<vmem>>, vector<128x256xf32>,
    return
  }
  func.func @transform_0(%arg0: i32) -> (i32, i32) {
    %c0_i32 = arith.constant 0 : i32
    %c0_i32_0 = arith.constant 0 : i32
    %c0_i32_1 = arith.constant 0 : i32
    return %c0_i32, %c0_i32_0 : i32, i32
  }
  func.func @transform_1(%arg0: i32) -> (i32, i32) {
    %c0_i32 = arith.constant 0 : i32
    %c0_i32_0 = arith.constant 0 : i32
    return %c0_i32, %arg0 : i32, i32
  }
  func.func @transform_2(%arg0: i32) -> (i32, i32) {
    %c0_i32 = arith.constant 0 : i32
    %c0_i32_0 = arith.constant 0 : i32
    return %c0_i32, %arg0 : i32, i32
  }
  func.func @transform_3(%arg0: i32) -> (i32, i32) {
    %c0_i32 = arith.constant 0 : i32
    %c0_i32_0 = arith.constant 0 : i32
    return %c0_i32, %arg0 : i32, i32
  }
  func.func @transform_4(%arg0: i32) -> (i32, i32) {
    %c0_i32 = arith.constant 0 : i32
    %c0_i32_0 = arith.constant 0 : i32
    return %c0_i32, %arg0 : i32, i32
  }
}

</mosaic_0001>

<llo_original>
// kernel: tpu_custom_call.1
$region0: #{tpu_custom_call.1}
  #allocation0 [shape = 'u32[]', space=smem, size = 0x4, offset = 0x4, fixed_abs, tag = 'smem constant byte address 0x4 - core index']
  #allocation1 [shape = 'u32[144,128]{1,0:T(1,128)}', space=vmem, size = 0x12000, scoped, tag = 'internal scratch']
  %s0 = inlined_call_operand.hbm [shape: f32[128,256], index: 0, kind: input, shape index: {}]
  %s1 = inlined_call_operand.hbm [shape: f32[256,512], index: 1, kind: input, shape index: {}]
  %s2 = inlined_call_operand.hbm [shape: f32[1,512], index: 2, kind: input, shape index: {}]
  %s3 = inlined_call_operand.vmem [shape: f32[1,512], index: 3, kind: input, shape index: {}]
  %s4 = inlined_call_operand.hbm [shape: f32[128,512], index: 4, kind: output, shape index: {}]
  %s5 = sld [smem:[#allocation0]]
  $region61: #{tpu_custom_call.1} parent=0
    _
  %s7 = ssub.s32 1, %s5
  %s8 = scalar_select 0, %s7, %s5
  $region1: #{tpu_custom_call.1} parent=0
    #allocation2 [shape = 'u8[131072]{0}', space=vmem, size = 0x20000, scoped, tag = 'input window, operand 0, single buffered']
    #allocation3 [shape = 's32[2]{0}', space=sflag, size = 0x8, scoped, tag = 'scoped memory for tpu_custom_call.1']
    #allocation4 [shape = 's32[2]{0}', space=sflag, size = 0x8, scoped, tag = 'scoped memory for tpu_custom_call.1']
    #allocation5 [shape = 'u8[524288]{0}', space=vmem, size = 0x80000, scoped, tag = 'input window, operand 1']
    #allocation6 [shape = 's32[2]{0}', space=sflag, size = 0x8, scoped, tag = 'scoped memory for tpu_custom_call.1']
    #allocation7 [shape = 'u8[2048]{0}', space=vmem, size = 0x800, scoped, tag = 'input window, operand 2']
    #allocation8 [shape = 'u8[262144]{0}', space=vmem, size = 0x40000, scoped, tag = 'output window, operand 0']
    %9 = vsyncpa [#allocation3], 0
    %10 = vsyncpa [#allocation6], 0
    %s11 = scalar_lea.sflag [#allocation6], 1
    %12 = vsyncpa %s11, 0
    %13 = vsyncpa [#allocation4], 0
    %s14 = scalar_lea.sflag [#allocation4], 1
    %15 = vsyncpa %s14, 0
    loop: start=0, step=1, limit=4
    $region2: #{tpu_custom_call.1} parent=1 // loop_pre_header
      _
    $region3: #{tpu_custom_call.1} parent=1 // loop_header
      %s17 = sphi 0, %s21
      %p18 = scmp.ge.s32.totalorder %s17, 4
      %s25 = sphi 0, %s25
      %s27 = sphi 0, %s25
      %s28 = sphi 0, %s27
      %s42 = sphi 0, %s28
      %s48 = sphi 0, %s50
      %s51 = sphi 0, %s48
      %s52 = sphi 0, %s51
      %s68 = sphi 0, %s52
      %s74 = sphi 0, %s76
      %s77 = sphi 0, %s74
      %s78 = sphi 0, %s77
      %s94 = sphi 0, %s78
      %s100 = sphi 0, %s102
      %s103 = sphi 0, %s100
      %s104 = sphi 0, %s103
      %s120 = sphi 0, %s104
      %s126 = sphi 0, %s128
      %s129 = sphi 0, %s126
      %s130 = sphi 0, %s129
      %s146 = sphi 0, %s130
    $region4: #{tpu_custom_call.1} parent=1 // loop_header_branch
      %20 = sbr.rel (%p18) target = $region8
    $region5: #{tpu_custom_call.1} parent=1 // loop_body
      %s22 = ssub.s32 %s17, 1
      %s23 = ssub.s32 %s17, 2
      %s24 = sadd.s32 %s17, 1
      %s26 = sadd.s32 %s25, 1
      %p29 = scmp.eq.s32.totalorder %s17, 1
      %p30 = scmp.ne.s32.totalorder %s25, %s27
      %p31 = scmp.eq.s32.totalorder %s17, 0
      %p32 = por %p30, %p31
      %p33 = scmp.ne.s32.totalorder %s25, %s27
      %p34 = scmp.eq.s32.totalorder %s22, 1
      %p35 = por %p33, %p34
      %p36 = scmp.ne.s32.totalorder %s27, %s28
      %p37 = scmp.eq.s32.totalorder %s22, 0
      %p38 = por %p36, %p37
      %p39 = scmp.ne.s32.totalorder %s27, %s28
      %p40 = scmp.eq.s32.totalorder %s23, 1
      %p41 = por %p39, %p40
      %p43 = scmp.ne.s32.totalorder %s28, %s42
      %p44 = scmp.eq.s32.totalorder %s23, 0
      %p45 = por %p43, %p44
      %s46 = ssub.s32 %s17, %s24
      %p47 = scmp.eq.s32.totalorder %s46, 0
      %s49 = sadd.s32 %s48, 1
      %s50 = scalar_select %p47, %s48, %s49
      %p53 = pneg %p47
      %p54 = scmp.eq.s32.totalorder %s17, 1
      %p55 = por %p53, %p54
      %p56 = scmp.ne.s32.totalorder %s48, %s51
      %p57 = scmp.eq.s32.totalorder %s17, 0
      %p58 = por %p56, %p57
      %p59 = scmp.ne.s32.totalorder %s48, %s51
      %p60 = scmp.eq.s32.totalorder %s22, 1
      %p61 = por %p59, %p60
      %p62 = scmp.ne.s32.totalorder %s51, %s52
      %p63 = scmp.eq.s32.totalorder %s22, 0
      %p64 = por %p62, %p63
      %p65 = scmp.ne.s32.totalorder %s51, %s52
      %p66 = scmp.eq.s32.totalorder %s23, 1
      %p67 = por %p65, %p66
      %p69 = scmp.ne.s32.totalorder %s52, %s68
      %p70 = scmp.eq.s32.totalorder %s23, 0
      %p71 = por %p69, %p70
      %s72 = ssub.s32 %s17, %s24
      %p73 = scmp.eq.s32.totalorder %s72, 0
      %s75 = sadd.s32 %s74, 1
      %s76 = scalar_select %p73, %s74, %s75
      %p79 = pneg %p73
      %p80 = scmp.eq.s32.totalorder %s17, 1
      %p81 = por %p79, %p80
      %p82 = scmp.ne.s32.totalorder %s74, %s77
      %p83 = scmp.eq.s32.totalorder %s17, 0
      %p84 = por %p82, %p83
      %p85 = scmp.ne.s32.totalorder %s74, %s77
      %p86 = scmp.eq.s32.totalorder %s22, 1
      %p87 = por %p85, %p86
      %p88 = scmp.ne.s32.totalorder %s77, %s78
      %p89 = scmp.eq.s32.totalorder %s22, 0
      %p90 = por %p88, %p89
      %p91 = scmp.ne.s32.totalorder %s77, %s78
      %p92 = scmp.eq.s32.totalorder %s23, 1
      %p93 = por %p91, %p92
      %p95 = scmp.ne.s32.totalorder %s78, %s94
      %p96 = scmp.eq.s32.totalorder %s23, 0
      %p97 = por %p95, %p96
      %s98 = ssub.s32 %s17, %s24
      %p99 = scmp.eq.s32.totalorder %s98, 0
      %s101 = sadd.s32 %s100, 1
      %s102 = scalar_select %p99, %s100, %s101
      %p105 = pneg %p99
      %p106 = scmp.eq.s32.totalorder %s17, 1
      %p107 = por %p105, %p106
      %p108 = scmp.ne.s32.totalorder %s100, %s103
      %p109 = scmp.eq.s32.totalorder %s17, 0
      %p110 = por %p108, %p109
      %p111 = scmp.ne.s32.totalorder %s100, %s103
      %p112 = scmp.eq.s32.totalorder %s22, 1
      %p113 = por %p111, %p112
      %p114 = scmp.ne.s32.totalorder %s103, %s104
      %p115 = scmp.eq.s32.totalorder %s22, 0
      %p116 = por %p114, %p115
      %p117 = scmp.ne.s32.totalorder %s103, %s104
      %p118 = scmp.eq.s32.totalorder %s23, 1
      %p119 = por %p117, %p118
      %p121 = scmp.ne.s32.totalorder %s104, %s120
      %p122 = scmp.eq.s32.totalorder %s23, 0
      %p123 = por %p121, %p122
      %s124 = ssub.s32 %s17, %s24
      %p125 = scmp.eq.s32.totalorder %s124, 0
      %s127 = sadd.s32 %s126, 1
      %s128 = scalar_select %p125, %s126, %s127
      %p131 = pneg %p125
      %p132 = scmp.eq.s32.totalorder %s17, 1
      %p133 = por %p131, %p132
      %p134 = scmp.ne.s32.totalorder %s126, %s129
      %p135 = scmp.eq.s32.totalorder %s17, 0
      %p136 = por %p134, %p135
      %p137 = scmp.ne.s32.totalorder %s126, %s129
      %p138 = scmp.eq.s32.totalorder %s22, 1
      %p139 = por %p137, %p138
      %p140 = scmp.ne.s32.totalorder %s129, %s130
      %p141 = scmp.eq.s32.totalorder %s22, 0
      %p142 = por %p140, %p141
      %p143 = scmp.ne.s32.totalorder %s129, %s130
      %p144 = scmp.eq.s32.totalorder %s23, 1
      %p145 = por %p143, %p144
      %p147 = scmp.ne.s32.totalorder %s130, %s146
      %p148 = scmp.eq.s32.totalorder %s23, 0
      %p149 = por %p147, %p148
      %p150 = scmp.le.s32.totalorder 1, %s17
      %p151 = scmp.lt.s32.totalorder %s17, 3
      %p152 = pnand %p150, %p151
      %p153 = pneg %p152
      // Predicated region
      $region9: #{tpu_custom_call.1} parent=5 // pred_check
        _
      $region10: #{tpu_custom_call.1} parent=5 // pred_check_branch
        %155 = sbr.rel (%p152) target = $region12
      $region11: #{tpu_custom_call.1} parent=5 // pred_region
        %s156 = ssub.s32 %s17, 1
        // Predicated region
        $region13: #{tpu_custom_call.1} parent=11 // pred_check
          %p157 = pneg %p38
        $region14: #{tpu_custom_call.1} parent=11 // pred_check_branch
          %159 = sbr.rel (%p157) target = $region16
        $region15: #{tpu_custom_call.1} parent=11 // pred_region
          %s161 = ssub.s32 4096, 4096
          %162 = vsyncadd [#allocation3], %s161
          %s163 = sshll.u32 [#allocation2], 4
          %s164 = int_to_ptr.vmem [resolvable:$true] %s163
          %169 = dma.hbm_to_vmem [thread:$0]  %s0, 4096, %s164, [#allocation3], 256, 256, 16
        $region16: #{tpu_custom_call.1} parent=11 // pred_fallthru
          _
      $region12: #{tpu_custom_call.1} parent=5 // pred_fallthru
        _
      %p170 = scmp.lt.s32.totalorder %s17, 2
      // Predicated region
      $region17: #{tpu_custom_call.1} parent=5 // pred_check
        %p171 = pneg %p170
      $region18: #{tpu_custom_call.1} parent=5 // pred_check_branch
        %173 = sbr.rel (%p171) target = $region20
      $region19: #{tpu_custom_call.1} parent=5 // pred_region
        // Predicated region
        $region21: #{tpu_custom_call.1} parent=19 // pred_check
          %p174 = pneg %p58
        $region22: #{tpu_custom_call.1} parent=19 // pred_check_branch
          %176 = sbr.rel (%p174) target = $region24
        $region23: #{tpu_custom_call.1} parent=19 // pred_region
          %s177 = sand.u32 %s17, 1
          %s178 = scalar_lea.sflag [#allocation6], %s177
          %s179 = sand.u32 %s48, 1
          %s180 = smul.addr %s179, 512
          %s181 = scalar_lea.vmem [#allocation5], %s180
          %s182 = smul.u32 2, %s17
          %s184 = ssub.s32 8192, 8192
          %185 = vsyncadd %s178, %s184
          %s186 = smul.addr %s182, 128
          %s187 = scalar_lea.hbm %s1, %s186
          %s188 = sshll.u32 %s181, 4
          %s189 = int_to_ptr.vmem [resolvable:$true] %s188
          %194 = dma.hbm_to_vmem [thread:$0]  %s187, 8192, %s189, %s178, 512, 256, 16
        $region24: #{tpu_custom_call.1} parent=19 // pred_fallthru
          _
        // Predicated region
        $region25: #{tpu_custom_call.1} parent=19 // pred_check
          %p195 = pneg %p84
        $region26: #{tpu_custom_call.1} parent=19 // pred_check_branch
          %197 = sbr.rel (%p195) target = $region28
        $region27: #{tpu_custom_call.1} parent=19 // pred_region
          %s198 = sand.u32 %s17, 1
          %s199 = scalar_lea.sflag [#allocation6], %s198
          %s200 = sand.u32 %s74, 1
          %s201 = smul.addr %s200, 2
          %s202 = scalar_lea.vmem [#allocation7], %s201
          %s203 = smul.u32 2, %s17
          %s205 = ssub.s32 32, 32
          %206 = vsyncadd %s199, %s205
          %s207 = smul.addr %s203, 16
          %s208 = scalar_lea.hbm %s2, %s207
          %s210 = sshll.u32 %s202, 4
          %s211 = int_to_ptr.vmem [resolvable:$true] %s210
          %213 = dma.hbm_to_vmem [thread:$0]  %s208, 32, %s211, %s199
        $region28: #{tpu_custom_call.1} parent=19 // pred_fallthru
          _
        // Predicated region
        $region29: #{tpu_custom_call.1} parent=19 // pred_check
          %p214 = pneg %p110
        $region30: #{tpu_custom_call.1} parent=19 // pred_check_branch
          %216 = sbr.rel (%p214) target = $region32
        $region31: #{tpu_custom_call.1} parent=19 // pred_region
          %s217 = smul.u32 2, %s17
          %p218 = scmp.lt.s32.totalorder %s217, 3
          %s219 = scalar_select %p218, %s217, 3
          %s220 = scalar_lea.vmem %s3, %s219
          %s221 = smul.u32 2, %s17
        $region32: #{tpu_custom_call.1} parent=19 // pred_fallthru
          _
      $region20: #{tpu_custom_call.1} parent=5 // pred_fallthru
        _
      %p222 = scmp.le.s32.totalorder 1, %s17
      %p223 = scmp.lt.s32.totalorder %s17, 3
      %p224 = pnand %p222, %p223
      %p225 = pneg %p224
      // Predicated region
      $region33: #{tpu_custom_call.1} parent=5 // pred_check
        _
      $region34: #{tpu_custom_call.1} parent=5 // pred_check_branch
        %227 = sbr.rel (%p224) target = $region36
      $region35: #{tpu_custom_call.1} parent=5 // pred_region
        %s228 = ssub.s32 %s17, 1
        // Predicated region
        $region37: #{tpu_custom_call.1} parent=35 // pred_check
          %p229 = pneg %p38
        $region38: #{tpu_custom_call.1} parent=35 // pred_check_branch
          %231 = sbr.rel (%p229) target = $region40
        $region39: #{tpu_custom_call.1} parent=35 // pred_region
          %232 = dma.done [#allocation3], 4096
        $region40: #{tpu_custom_call.1} parent=35 // pred_fallthru
          _
        %s233 = sand.u32 %s22, 1
        %s234 = scalar_lea.sflag [#allocation6], %s233
        %s235 = sand.u32 %s51, 1
        %s236 = smul.addr %s235, 512
        %s237 = scalar_lea.vmem [#allocation5], %s236
        // Predicated region
        $region41: #{tpu_custom_call.1} parent=35 // pred_check
          %p238 = pneg %p64
        $region42: #{tpu_custom_call.1} parent=35 // pred_check_branch
          %240 = sbr.rel (%p238) target = $region44
        $region43: #{tpu_custom_call.1} parent=35 // pred_region
          %241 = dma.done %s234, 8192
        $region44: #{tpu_custom_call.1} parent=35 // pred_fallthru
          _
        %s242 = sand.u32 %s22, 1
        %s243 = scalar_lea.sflag [#allocation6], %s242
        %s244 = sand.u32 %s77, 1
        %s245 = smul.addr %s244, 2
        %s246 = scalar_lea.vmem [#allocation7], %s245
        // Predicated region
        $region45: #{tpu_custom_call.1} parent=35 // pred_check
          %p247 = pneg %p90
        $region46: #{tpu_custom_call.1} parent=35 // pred_check_branch
          %249 = sbr.rel (%p247) target = $region48
        $region47: #{tpu_custom_call.1} parent=35 // pred_region
          %250 = dma.done %s243, 32
        $region48: #{tpu_custom_call.1} parent=35 // pred_fallthru
          _
        %p251 = pneg %p38
        %p252 = pneg %p35
        %s253 = sand.u32 %s22, 1
        %s254 = scalar_lea.sflag [#allocation6], %s253
        %s255 = sand.u32 %s51, 1
        %s256 = smul.addr %s255, 512
        %s257 = scalar_lea.vmem [#allocation5], %s256
        %p258 = pneg %p64
        %p259 = pneg %p61
        %s260 = sand.u32 %s22, 1
        %s261 = scalar_lea.sflag [#allocation6], %s260
        %s262 = sand.u32 %s77, 1
        %s263 = smul.addr %s262, 2
        %s264 = scalar_lea.vmem [#allocation7], %s263
        %p265 = pneg %p90
        %p266 = pneg %p87
        %s267 = smul.u32 2, %s22
        %p268 = scmp.lt.s32.totalorder %s267, 3
        %s269 = scalar_select %p268, %s267, 3
        %s270 = scalar_lea.vmem %s3, %s269
        %p271 = pneg %p116
        %p272 = pneg %p113
        %p273 = pneg %p142
        %p274 = pneg %p139
        %s275 = sand.u32 %s129, 1
        %s276 = scalar_lea.sflag [#allocation4], %s275
        %s277 = sand.u32 %s129, 1
        %s278 = smul.addr %s277, 256
        %s279 = scalar_lea.vmem [#allocation8], %s278
        %s280 = smul.u32 2, %s22
        %s281 = smul.u32 2, %s22
        %s282 = smul.u32 2, %s22
        %p283 = scmp.lt.s32.totalorder %s282, 3
        %s284 = scalar_select %p283, %s282, 3
        %s285 = scalar_lea.vmem %s3, %s284
        %s286 = smul.u32 2, %s22
        %s287 = smul.u32 2, %s22
        %v288 = vld [vmem:[#allocation2] sm:$0xff]
        %v289 = vld [vmem:[#allocation2 + $0x8] sm:$0xff]
        %v290 = vld [vmem:[#allocation2 + $0x10] sm:$0xff]
        %v291 = vld [vmem:[#allocation2 + $0x18] sm:$0xff]
        %v292 = vld [vmem:[#allocation2 + $0x20] sm:$0xff]
        %v293 = vld [vmem:[#allocation2 + $0x28] sm:$0xff]
        %v294 = vld [vmem:[#allocation2 + $0x30] sm:$0xff]
        %v295 = vld [vmem:[#allocation2 + $0x38] sm:$0xff]
        %v296 = vld [vmem:[#allocation2 + $0x40] sm:$0xff]
        %v297 = vld [vmem:[#allocation2 + $0x48] sm:$0xff]
        %v298 = vld [vmem:[#allocation2 + $0x50] sm:$0xff]
        %v299 = vld [vmem:[#allocation2 + $0x58] sm:$0xff]
        %v300 = vld [vmem:[#allocation2 + $0x60] sm:$0xff]
        %v301 = vld [vmem:[#allocation2 + $0x68] sm:$0xff]
        %v302 = vld [vmem:[#allocation2 + $0x70] sm:$0xff]
        %v303 = vld [vmem:[#allocation2 + $0x78] sm:$0xff]
        %v304 = vld [vmem:[#allocation2 + $0x80] sm:$0xff]
        %v305 = vld [vmem:[#allocation2 + $0x88] sm:$0xff]
        %v306 = vld [vmem:[#allocation2 + $0x90] sm:$0xff]
        %v307 = vld [vmem:[#allocation2 + $0x98] sm:$0xff]
        %v308 = vld [vmem:[#allocation2 + $0xa0] sm:$0xff]
        %v309 = vld [vmem:[#allocation2 + $0xa8] sm:$0xff]
        %v310 = vld [vmem:[#allocation2 + $0xb0] sm:$0xff]
        %v311 = vld [vmem:[#allocation2 + $0xb8] sm:$0xff]
        %v312 = vld [vmem:[#allocation2 + $0xc0] sm:$0xff]
        %v313 = vld [vmem:[#allocation2 + $0xc8] sm:$0xff]
        %v314 = vld [vmem:[#allocation2 + $0xd0] sm:$0xff]
        %v315 = vld [vmem:[#allocation2 + $0xd8] sm:$0xff]
        %v316 = vld [vmem:[#allocation2 + $0xe0] sm:$0xff]
        %v317 = vld [vmem:[#allocation2 + $0xe8] sm:$0xff]
        %v318 = vld [vmem:[#allocation2 + $0xf0] sm:$0xff]
        %v319 = vld [vmem:[#allocation2 + $0xf8] sm:$0xff]
        %v320 = vld [vmem:[%s237] sm:$0xff]
        %v321 = vld [vmem:[%s237 + $0x8] sm:$0xff]
        %v322 = vld [vmem:[%s237 + $0x10] sm:$0xff]
        %v323 = vld [vmem:[%s237 + $0x18] sm:$0xff]
        %v324 = vld [vmem:[%s237 + $0x20] sm:$0xff]
        %v325 = vld [vmem:[%s237 + $0x28] sm:$0xff]
        %v326 = vld [vmem:[%s237 + $0x30] sm:$0xff]
        %v327 = vld [vmem:[%s237 + $0x38] sm:$0xff]
        %v328 = vld [vmem:[%s237 + $0x40] sm:$0xff]
        %v329 = vld [vmem:[%s237 + $0x48] sm:$0xff]
        %v330 = vld [vmem:[%s237 + $0x50] sm:$0xff]
        %v331 = vld [vmem:[%s237 + $0x58] sm:$0xff]
        %v332 = vld [vmem:[%s237 + $0x60] sm:$0xff]
        %v333 = vld [vmem:[%s237 + $0x68] sm:$0xff]
        %v334 = vld [vmem:[%s237 + $0x70] sm:$0xff]
        %v335 = vld [vmem:[%s237 + $0x78] sm:$0xff]
        %v336 = vld [vmem:[%s237 + $0x80] sm:$0xff]
        %v337 = vld [vmem:[%s237 + $0x88] sm:$0xff]
        %v338 = vld [vmem:[%s237 + $0x90] sm:$0xff]
        %v339 = vld [vmem:[%s237 + $0x98] sm:$0xff]
        %v340 = vld [vmem:[%s237 + $0xa0] sm:$0xff]
        %v341 = vld [vmem:[%s237 + $0xa8] sm:$0xff]
        %v342 = vld [vmem:[%s237 + $0xb0] sm:$0xff]
        %v343 = vld [vmem:[%s237 + $0xb8] sm:$0xff]
        %v344 = vld [vmem:[%s237 + $0xc0] sm:$0xff]
        %v345 = vld [vmem:[%s237 + $0xc8] sm:$0xff]
        %v346 = vld [vmem:[%s237 + $0xd0] sm:$0xff]
        %v347 = vld [vmem:[%s237 + $0xd8] sm:$0xff]
        %v348 = vld [vmem:[%s237 + $0xe0] sm:$0xff]
        %v349 = vld [vmem:[%s237 + $0xe8] sm:$0xff]
        %v350 = vld [vmem:[%s237 + $0xf0] sm:$0xff]
        %v351 = vld [vmem:[%s237 + $0xf8] sm:$0xff]
        %v352 = vld [vmem:[%s237 + $0x100] sm:$0xff]
        %v353 = vld [vmem:[%s237 + $0x108] sm:$0xff]
        %v354 = vld [vmem:[%s237 + $0x110] sm:$0xff]
        %v355 = vld [vmem:[%s237 + $0x118] sm:$0xff]
        %v356 = vld [vmem:[%s237 + $0x120] sm:$0xff]
        %v357 = vld [vmem:[%s237 + $0x128] sm:$0xff]
        %v358 = vld [vmem:[%s237 + $0x130] sm:$0xff]
        %v359 = vld [vmem:[%s237 + $0x138] sm:$0xff]
        %v360 = vld [vmem:[%s237 + $0x140] sm:$0xff]
        %v361 = vld [vmem:[%s237 + $0x148] sm:$0xff]
        %v362 = vld [vmem:[%s237 + $0x150] sm:$0xff]
        %v363 = vld [vmem:[%s237 + $0x158] sm:$0xff]
        %v364 = vld [vmem:[%s237 + $0x160] sm:$0xff]
        %v365 = vld [vmem:[%s237 + $0x168] sm:$0xff]
        %v366 = vld [vmem:[%s237 + $0x170] sm:$0xff]
        %v367 = vld [vmem:[%s237 + $0x178] sm:$0xff]
        %v368 = vld [vmem:[%s237 + $0x180] sm:$0xff]
        %v369 = vld [vmem:[%s237 + $0x188] sm:$0xff]
        %v370 = vld [vmem:[%s237 + $0x190] sm:$0xff]
        %v371 = vld [vmem:[%s237 + $0x198] sm:$0xff]
        %v372 = vld [vmem:[%s237 + $0x1a0] sm:$0xff]
        %v373 = vld [vmem:[%s237 + $0x1a8] sm:$0xff]
        %v374 = vld [vmem:[%s237 + $0x1b0] sm:$0xff]
        %v375 = vld [vmem:[%s237 + $0x1b8] sm:$0xff]
        %v376 = vld [vmem:[%s237 + $0x1c0] sm:$0xff]
        %v377 = vld [vmem:[%s237 + $0x1c8] sm:$0xff]
        %v378 = vld [vmem:[%s237 + $0x1d0] sm:$0xff]
        %v379 = vld [vmem:[%s237 + $0x1d8] sm:$0xff]
        %v380 = vld [vmem:[%s237 + $0x1e0] sm:$0xff]
        %v381 = vld [vmem:[%s237 + $0x1e8] sm:$0xff]
        %v382 = vld [vmem:[%s237 + $0x1f0] sm:$0xff]
        %v383 = vld [vmem:[%s237 + $0x1f8] sm:$0xff]
        %384 = vmatprep.subr.mxu0 %v351
        %385 = vmatpush1.msra.mxu0 %v350
        %386 = vmatprep.subr.mxu0 %v349
        %387 = vmatpush1.msra.mxu0 %v348
        %388 = vmatprep.subr.mxu0 %v347
        %389 = vmatpush1.msra.mxu0 %v346
        %390 = vmatprep.subr.mxu0 %v345
        %391 = vmatpush1.msra.mxu0 %v344
        %392 = vmatprep.subr.mxu0 %v343
        %393 = vmatpush1.msra.mxu0 %v342
        %394 = vmatprep.subr.mxu0 %v341
        %395 = vmatpush1.msra.mxu0 %v340
        %396 = vmatprep.subr.mxu0 %v339
        %397 = vmatpush1.msra.mxu0 %v338
        %398 = vmatprep.subr.mxu0 %v337
        %399 = vmatpush1.msra.mxu0 %v336
        %400 = vmatprep.subr.mxu0 %v335
        %401 = vmatpush1.msra.mxu0 %v334
        %402 = vmatprep.subr.mxu0 %v333
        %403 = vmatpush1.msra.mxu0 %v332
        %404 = vmatprep.subr.mxu0 %v331
        %405 = vmatpush1.msra.mxu0 %v330
        %406 = vmatprep.subr.mxu0 %v329
        %407 = vmatpush1.msra.mxu0 %v328
        %408 = vmatprep.subr.mxu0 %v327
        %409 = vmatpush1.msra.mxu0 %v326
        %410 = vmatprep.subr.mxu0 %v325
        %411 = vmatpush1.msra.mxu0 %v324
        %412 = vmatprep.subr.mxu0 %v323
        %413 = vmatpush1.msra.mxu0 %v322
        %414 = vmatprep.subr.mxu0 %v321
        %415 = vmatpush1.msra.mxu0 %v320
        %416 = vmatprep.subr.mxu0 %v383
        %417 = vmatpush2.msra.mxu0 %v382
        %418 = vmatprep.subr.mxu0 %v381
        %419 = vmatpush2.msra.mxu0 %v380
        %420 = vmatprep.subr.mxu0 %v379
        %421 = vmatpush2.msra.mxu0 %v378
        %422 = vmatprep.subr.mxu0 %v377
        %423 = vmatpush2.msra.mxu0 %v376
        %424 = vmatprep.subr.mxu0 %v375
        %425 = vmatpush2.msra.mxu0 %v374
        %426 = vmatprep.subr.mxu0 %v373
        %427 = vmatpush2.msra.mxu0 %v372
        %428 = vmatprep.subr.mxu0 %v371
        %429 = vmatpush2.msra.mxu0 %v370
        %430 = vmatprep.subr.mxu0 %v369
        %431 = vmatpush2.msra.mxu0 %v368
        %432 = vmatprep.subr.mxu0 %v367
        %433 = vmatpush2.msra.mxu0 %v366
        %434 = vmatprep.subr.mxu0 %v365
        %435 = vmatpush2.msra.mxu0 %v364
        %436 = vmatprep.subr.mxu0 %v363
        %437 = vmatpush2.msra.mxu0 %v362
        %438 = vmatprep.subr.mxu0 %v361
        %439 = vmatpush2.msra.mxu0 %v360
        %440 = vmatprep.subr.mxu0 %v359
        %441 = vmatpush2.msra.mxu0 %v358
        %442 = vmatprep.subr.mxu0 %v357
        %443 = vmatpush2.msra.mxu0 %v356
        %444 = vmatprep.subr.mxu0 %v355
        %445 = vmatpush2.msra.mxu0 %v354
        %446 = vmatprep.subr.mxu0 %v353
        %447 = vmatpush2.msra.mxu0 %v352
        %448 = vmatprep.mubr.f32.mxu0 %v289
        %449 = vmatmul.mubr.f32.gmra.mxu0 %v288
        %v450 = vpop.f32.mrf.mxu0
        %v451 = vadd.f32 0.0, %v450
        %v452 = vpop.f32.mrf.mxu0
        %v453 = vadd.f32 0.0, %v452
        %454 = vmatprep.mubr.f32.mxu0 %v291
        %455 = vmatmul.mubr.f32.gmra.mxu0 %v290
        %v456 = vpop.f32.mrf.mxu0
        %v457 = vadd.f32 0.0, %v456
        %v458 = vpop.f32.mrf.mxu0
        %v459 = vadd.f32 0.0, %v458
        %460 = vmatprep.mubr.f32.mxu0 %v293
        %461 = vmatmul.mubr.f32.gmra.mxu0 %v292
        %v462 = vpop.f32.mrf.mxu0
        %v463 = vadd.f32 0.0, %v462
        %v464 = vpop.f32.mrf.mxu0
        %v465 = vadd.f32 0.0, %v464
        %466 = vmatprep.mubr.f32.mxu0 %v295
        %467 = vmatmul.mubr.f32.gmra.mxu0 %v294
        %v468 = vpop.f32.mrf.mxu0
        %v469 = vadd.f32 0.0, %v468
        %v470 = vpop.f32.mrf.mxu0
        %v471 = vadd.f32 0.0, %v470
        %472 = vmatprep.mubr.f32.mxu0 %v297
        %473 = vmatmul.mubr.f32.gmra.mxu0 %v296
        %v474 = vpop.f32.mrf.mxu0
        %v475 = vadd.f32 0.0, %v474
        %v476 = vpop.f32.mrf.mxu0
        %v477 = vadd.f32 0.0, %v476
        %478 = vmatprep.mubr.f32.mxu0 %v299
        %479 = vmatmul.mubr.f32.gmra.mxu0 %v298
        %v480 = vpop.f32.mrf.mxu0
        %v481 = vadd.f32 0.0, %v480
        %v482 = vpop.f32.mrf.mxu0
        %v483 = vadd.f32 0.0, %v482
        %484 = vmatprep.mubr.f32.mxu0 %v301
        %485 = vmatmul.mubr.f32.gmra.mxu0 %v300
        %v486 = vpop.f32.mrf.mxu0
        %v487 = vadd.f32 0.0, %v486
        %v488 = vpop.f32.mrf.mxu0
        %v489 = vadd.f32 0.0, %v488
        %490 = vmatprep.mubr.f32.mxu0 %v303
        %491 = vmatmul.mubr.f32.gmra.mxu0 %v302
        %v492 = vpop.f32.mrf.mxu0
        %v493 = vadd.f32 0.0, %v492
        %v494 = vpop.f32.mrf.mxu0
        %v495 = vadd.f32 0.0, %v494
        %496 = vmatprep.mubr.f32.mxu0 %v305
        %497 = vmatmul.mubr.f32.gmra.mxu0 %v304
        %v498 = vpop.f32.mrf.mxu0
        %v499 = vadd.f32 0.0, %v498
        %v500 = vpop.f32.mrf.mxu0
        %v501 = vadd.f32 0.0, %v500
        %502 = vmatprep.mubr.f32.mxu0 %v307
        %503 = vmatmul.mubr.f32.gmra.mxu0 %v306
        %v504 = vpop.f32.mrf.mxu0
        %v505 = vadd.f32 0.0, %v504
        %v506 = vpop.f32.mrf.mxu0
        %v507 = vadd.f32 0.0, %v506
        %508 = vmatprep.mubr.f32.mxu0 %v309
        %509 = vmatmul.mubr.f32.gmra.mxu0 %v308
        %v510 = vpop.f32.mrf.mxu0
        %v511 = vadd.f32 0.0, %v510
        %v512 = vpop.f32.mrf.mxu0
        %v513 = vadd.f32 0.0, %v512
        %514 = vmatprep.mubr.f32.mxu0 %v311
        %515 = vmatmul.mubr.f32.gmra.mxu0 %v310
        %v516 = vpop.f32.mrf.mxu0
        %v517 = vadd.f32 0.0, %v516
        %v518 = vpop.f32.mrf.mxu0
        %v519 = vadd.f32 0.0, %v518
        %520 = vmatprep.mubr.f32.mxu0 %v313
        %521 = vmatmul.mubr.f32.gmra.mxu0 %v312
        %v522 = vpop.f32.mrf.mxu0
        %v523 = vadd.f32 0.0, %v522
        %v524 = vpop.f32.mrf.mxu0
        %v525 = vadd.f32 0.0, %v524
        %526 = vmatprep.mubr.f32.mxu0 %v315
        %527 = vmatmul.mubr.f32.gmra.mxu0 %v314
        %v528 = vpop.f32.mrf.mxu0
        %v529 = vadd.f32 0.0, %v528
        %v530 = vpop.f32.mrf.mxu0
        %v531 = vadd.f32 0.0, %v530
        %532 = vmatprep.mubr.f32.mxu0 %v317
        %533 = vmatmul.mubr.f32.gmra.mxu0 %v316
        %v534 = vpop.f32.mrf.mxu0
        %v535 = vadd.f32 0.0, %v534
        %v536 = vpop.f32.mrf.mxu0
        %v537 = vadd.f32 0.0, %v536
        %538 = vmatprep.mubr.f32.mxu0 %v319
        %539 = vmatmul.mubr.f32.gmra.mxu0 %v318
        %v540 = vpop.f32.mrf.mxu0
        %v541 = vadd.f32 0.0, %v540
        %v542 = vpop.f32.mrf.mxu0
        %v543 = vadd.f32 0.0, %v542
        %544 = vdwg.mxu0
        %v545 = vadd.f32 %v451, %v457
        %v546 = vadd.f32 %v545, %v463
        %v547 = vadd.f32 %v546, %v469
        %v548 = vadd.f32 %v547, %v475
        %v549 = vadd.f32 %v548, %v481
        %v550 = vadd.f32 %v549, %v487
        %v551 = vadd.f32 %v550, %v493
        %v552 = vadd.f32 %v551, %v499
        %v553 = vadd.f32 %v552, %v505
        %v554 = vadd.f32 %v553, %v511
        %v555 = vadd.f32 %v554, %v517
        %v556 = vadd.f32 %v555, %v523
        %v557 = vadd.f32 %v556, %v529
        %v558 = vadd.f32 %v557, %v535
        %v559 = vadd.f32 %v558, %v541
        %v560 = vrot.slane %v559, 4
        %v561 = vadd.f32 %v559, %v560
        %v562 = vrot.slane %v561, 2
        %v563 = vadd.f32 %v561, %v562
        %v564 = vrot.slane %v563, 1
        %v565 = vadd.f32 %v563, %v564
        %v566 = vadd.f32 %v453, %v459
        %v567 = vadd.f32 %v566, %v465
        %v568 = vadd.f32 %v567, %v471
        %v569 = vadd.f32 %v568, %v477
        %v570 = vadd.f32 %v569, %v483
        %v571 = vadd.f32 %v570, %v489
        %v572 = vadd.f32 %v571, %v495
        %v573 = vadd.f32 %v572, %v501
        %v574 = vadd.f32 %v573, %v507
        %v575 = vadd.f32 %v574, %v513
        %v576 = vadd.f32 %v575, %v519
        %v577 = vadd.f32 %v576, %v525
        %v578 = vadd.f32 %v577, %v531
        %v579 = vadd.f32 %v578, %v537
        %v580 = vadd.f32 %v579, %v543
        %v581 = vrot.slane %v580, 4
        %v582 = vadd.f32 %v580, %v581
        %v583 = vrot.slane %v582, 2
        %v584 = vadd.f32 %v582, %v583
        %v585 = vrot.slane %v584, 1
        %v586 = vadd.f32 %v584, %v585
        %v587 = vmul.f32 %v451, %v451
        %v588 = vmul.f32 %v453, %v453
        %v589 = vmul.f32 %v457, %v457
        %v590 = vmul.f32 %v459, %v459
        %v591 = vmul.f32 %v463, %v463
        %v592 = vmul.f32 %v465, %v465
        %v593 = vmul.f32 %v469, %v469
        %v594 = vmul.f32 %v471, %v471
        %v595 = vmul.f32 %v475, %v475
        %v596 = vmul.f32 %v477, %v477
        %v597 = vmul.f32 %v481, %v481
        %v598 = vmul.f32 %v483, %v483
        %v599 = vmul.f32 %v487, %v487
        %v600 = vmul.f32 %v489, %v489
        %v601 = vmul.f32 %v493, %v493
        %v602 = vmul.f32 %v495, %v495
        %v603 = vmul.f32 %v499, %v499
        %v604 = vmul.f32 %v501, %v501
        %v605 = vmul.f32 %v505, %v505
        %v606 = vmul.f32 %v507, %v507
        %v607 = vmul.f32 %v511, %v511
        %v608 = vmul.f32 %v513, %v513
        %v609 = vmul.f32 %v517, %v517
        %v610 = vmul.f32 %v519, %v519
        %v611 = vmul.f32 %v523, %v523
        %v612 = vmul.f32 %v525, %v525
        %v613 = vmul.f32 %v529, %v529
        %v614 = vmul.f32 %v531, %v531
        %v615 = vmul.f32 %v535, %v535
        %v616 = vmul.f32 %v537, %v537
        %v617 = vmul.f32 %v541, %v541
        %v618 = vmul.f32 %v543, %v543
        %v619 = vadd.f32 %v587, %v589
        %v620 = vadd.f32 %v619, %v591
        %v621 = vadd.f32 %v620, %v593
        %v622 = vadd.f32 %v621, %v595
        %v623 = vadd.f32 %v622, %v597
        %v624 = vadd.f32 %v623, %v599
        %v625 = vadd.f32 %v624, %v601
        %v626 = vadd.f32 %v625, %v603
        %v627 = vadd.f32 %v626, %v605
        %v628 = vadd.f32 %v627, %v607
        %v629 = vadd.f32 %v628, %v609
        %v630 = vadd.f32 %v629, %v611
        %v631 = vadd.f32 %v630, %v613
        %v632 = vadd.f32 %v631, %v615
        %v633 = vadd.f32 %v632, %v617
        %v634 = vrot.slane %v633, 4
        %v635 = vadd.f32 %v633, %v634
        %v636 = vrot.slane %v635, 2
        %v637 = vadd.f32 %v635, %v636
        %v638 = vrot.slane %v637, 1
        %v639 = vadd.f32 %v637, %v638
        %v640 = vadd.f32 %v588, %v590
        %v641 = vadd.f32 %v640, %v592
        %v642 = vadd.f32 %v641, %v594
        %v643 = vadd.f32 %v642, %v596
        %v644 = vadd.f32 %v643, %v598
        %v645 = vadd.f32 %v644, %v600
        %v646 = vadd.f32 %v645, %v602
        %v647 = vadd.f32 %v646, %v604
        %v648 = vadd.f32 %v647, %v606
        %v649 = vadd.f32 %v648, %v608
        %v650 = vadd.f32 %v649, %v610
        %v651 = vadd.f32 %v650, %v612
        %v652 = vadd.f32 %v651, %v614
        %v653 = vadd.f32 %v652, %v616
        %v654 = vadd.f32 %v653, %v618
        %v655 = vrot.slane %v654, 4
        %v656 = vadd.f32 %v654, %v655
        %v657 = vrot.slane %v656, 2
        %v658 = vadd.f32 %v656, %v657
        %v659 = vrot.slane %v658, 1
        %v660 = vadd.f32 %v658, %v659
        %v661 = vmul.f32 %v565, 0.0078125
        %v662 = vmul.f32 %v586, 0.0078125
        %v663 = vmul.f32 %v639, 0.0078125
        %v664 = vmul.f32 %v660, 0.0078125
        %v665 = vmul.f32 %v661, %v661
        %v666 = vmul.f32 %v662, %v662
        %v667 = vsub.f32 %v663, %v665
        %v668 = vsub.f32 %v664, %v666
        %v669 = vmax.f32 %v667, 0.0
        %v670 = vmax.f32 %v668, 0.0
        %v671 = vadd.f32 %v669, 1e-05
        %v672 = vadd.f32 %v670, 1e-05
        %v673 = vrsqrt.pop %v671
        %v674 = vrsqrt.pop %v672
        %v675 = vld [vmem:[%s246] sm:$0x3]
        %v677 = vlaneseq
        %v678 = vshrl.u32 %v677, 7
        %v679 = vsub.s32 0, %v678
        %v680 = vrot.slane %v675, %v679
        %v681 = vlaneseq
        %v682 = vshrl.u32 %v681, 7
        %v683 = vsub.s32 1, %v682
        %v684 = vrot.slane %v675, %v683
        %v687 = vmul.f32 %v673, %v680
        %v688 = vmul.f32 %v674, %v684
        %v689 = vld [vmem:[%s285] sm:$0x3]
        %v690 = vmul.f32 %v661, %v687
        %v691 = vmul.f32 %v662, %v688
        %v694 = vcombine.low %v690, %v691
        %v696 = vunpack.c.l.s4 1966171168
        %v697 = vunpack.c.0.s8 %v696
        %v698 = vlaneseq
        %v699 = vshrl.u32 %v698, 7
        %v700 = vsub.s32 %v697, %v699
        %v701 = vrot.slane %v694, %v700
        %v703 = vunpack.c.l.s4 1966171168
        %v704 = vunpack.c.0.s8 %v703
        %v705 = vlaneseq
        %v706 = vshrl.u32 %v705, 7
        %v707 = vsub.s32 %v704, %v706
        %v708 = vrot.slane %v701, %v707
        %v710 = vsub.f32 %v689, %v708
        %v711 = vlaneseq
        %v712 = vshrl.u32 %v711, 7
        %v713 = vsub.s32 0, %v712
        %v714 = vrot.slane %v687, %v713
        %v715 = vlaneseq
        %v716 = vshrl.u32 %v715, 7
        %v717 = vsub.s32 0, %v716
        %v718 = vrot.slane %v688, %v717
        %v719 = vmul.f32 %v451, %v714
        %v720 = vmul.f32 %v453, %v718
        %v721 = vmul.f32 %v457, %v714
        %v722 = vmul.f32 %v459, %v718
        %v723 = vmul.f32 %v463, %v714
        %v724 = vmul.f32 %v465, %v718
        %v725 = vmul.f32 %v469, %v714
        %v726 = vmul.f32 %v471, %v718
        %v727 = vmul.f32 %v475, %v714
        %v728 = vmul.f32 %v477, %v718
        %v729 = vmul.f32 %v481, %v714
        %v730 = vmul.f32 %v483, %v718
        %v731 = vmul.f32 %v487, %v714
        %v732 = vmul.f32 %v489, %v718
        %v733 = vmul.f32 %v493, %v714
        %v734 = vmul.f32 %v495, %v718
        %v735 = vmul.f32 %v499, %v714
        %v736 = vmul.f32 %v501, %v718
        %v737 = vmul.f32 %v505, %v714
        %v738 = vmul.f32 %v507, %v718
        %v739 = vmul.f32 %v511, %v714
        %v740 = vmul.f32 %v513, %v718
        %v741 = vmul.f32 %v517, %v714
        %v742 = vmul.f32 %v519, %v718
        %v743 = vmul.f32 %v523, %v714
        %v744 = vmul.f32 %v525, %v718
        %v745 = vmul.f32 %v529, %v714
        %v746 = vmul.f32 %v531, %v718
        %v747 = vmul.f32 %v535, %v714
        %v748 = vmul.f32 %v537, %v718
        %v749 = vmul.f32 %v541, %v714
        %v750 = vmul.f32 %v543, %v718
        %v752 = vlaneseq
        %v753 = vshrl.u32 %v752, 7
        %v754 = vsub.s32 0, %v753
        %v755 = vrot.slane %v710, %v754
        %v756 = vlaneseq
        %v757 = vshrl.u32 %v756, 7
        %v758 = vsub.s32 1, %v757
        %v759 = vrot.slane %v710, %v758
        %v762 = vadd.f32 %v719, %v755
        %v763 = vadd.f32 %v720, %v759
        %v764 = vadd.f32 %v721, %v755
        %v765 = vadd.f32 %v722, %v759
        %v766 = vadd.f32 %v723, %v755
        %v767 = vadd.f32 %v724, %v759
        %v768 = vadd.f32 %v725, %v755
        %v769 = vadd.f32 %v726, %v759
        %v770 = vadd.f32 %v727, %v755
        %v771 = vadd.f32 %v728, %v759
        %v772 = vadd.f32 %v729, %v755
        %v773 = vadd.f32 %v730, %v759
        %v774 = vadd.f32 %v731, %v755
        %v775 = vadd.f32 %v732, %v759
        %v776 = vadd.f32 %v733, %v755
        %v777 = vadd.f32 %v734, %v759
        %v778 = vadd.f32 %v735, %v755
        %v779 = vadd.f32 %v736, %v759
        %v780 = vadd.f32 %v737, %v755
        %v781 = vadd.f32 %v738, %v759
        %v782 = vadd.f32 %v739, %v755
        %v783 = vadd.f32 %v740, %v759
        %v784 = vadd.f32 %v741, %v755
        %v785 = vadd.f32 %v742, %v759
        %v786 = vadd.f32 %v743, %v755
        %v787 = vadd.f32 %v744, %v759
        %v788 = vadd.f32 %v745, %v755
        %v789 = vadd.f32 %v746, %v759
        %v790 = vadd.f32 %v747, %v755
        %v791 = vadd.f32 %v748, %v759
        %v792 = vadd.f32 %v749, %v755
        %v793 = vadd.f32 %v750, %v759
        %v794 = vmax.f32 %v762, 0.0
        %v795 = vmax.f32 %v763, 0.0
        %v796 = vmax.f32 %v764, 0.0
        %v797 = vmax.f32 %v765, 0.0
        %v798 = vmax.f32 %v766, 0.0
        %v799 = vmax.f32 %v767, 0.0
        %v800 = vmax.f32 %v768, 0.0
        %v801 = vmax.f32 %v769, 0.0
        %v802 = vmax.f32 %v770, 0.0
        %v803 = vmax.f32 %v771, 0.0
        %v804 = vmax.f32 %v772, 0.0
        %v805 = vmax.f32 %v773, 0.0
        %v806 = vmax.f32 %v774, 0.0
        %v807 = vmax.f32 %v775, 0.0
        %v808 = vmax.f32 %v776, 0.0
        %v809 = vmax.f32 %v777, 0.0
        %v810 = vmax.f32 %v778, 0.0
        %v811 = vmax.f32 %v779, 0.0
        %v812 = vmax.f32 %v780, 0.0
        %v813 = vmax.f32 %v781, 0.0
        %v814 = vmax.f32 %v782, 0.0
        %v815 = vmax.f32 %v783, 0.0
        %v816 = vmax.f32 %v784, 0.0
        %v817 = vmax.f32 %v785, 0.0
        %v818 = vmax.f32 %v786, 0.0
        %v819 = vmax.f32 %v787, 0.0
        %v820 = vmax.f32 %v788, 0.0
        %v821 = vmax.f32 %v789, 0.0
        %v822 = vmax.f32 %v790, 0.0
        %v823 = vmax.f32 %v791, 0.0
        %v824 = vmax.f32 %v792, 0.0
        %v825 = vmax.f32 %v793, 0.0
        %826 = vst [vmem:[%s279] sm:$0xff] %v794
        %827 = vst [vmem:[%s279 + $0x8] sm:$0xff] %v795
        %828 = vst [vmem:[%s279 + $0x10] sm:$0xff] %v796
        %829 = vst [vmem:[%s279 + $0x18] sm:$0xff] %v797
        %830 = vst [vmem:[%s279 + $0x20] sm:$0xff] %v798
        %831 = vst [vmem:[%s279 + $0x28] sm:$0xff] %v799
        %832 = vst [vmem:[%s279 + $0x30] sm:$0xff] %v800
        %833 = vst [vmem:[%s279 + $0x38] sm:$0xff] %v801
        %834 = vst [vmem:[%s279 + $0x40] sm:$0xff] %v802
        %835 = vst [vmem:[%s279 + $0x48] sm:$0xff] %v803
        %836 = vst [vmem:[%s279 + $0x50] sm:$0xff] %v804
        %837 = vst [vmem:[%s279 + $0x58] sm:$0xff] %v805
        %838 = vst [vmem:[%s279 + $0x60] sm:$0xff] %v806
        %839 = vst [vmem:[%s279 + $0x68] sm:$0xff] %v807
        %840 = vst [vmem:[%s279 + $0x70] sm:$0xff] %v808
        %841 = vst [vmem:[%s279 + $0x78] sm:$0xff] %v809
        %842 = vst [vmem:[%s279 + $0x80] sm:$0xff] %v810
        %843 = vst [vmem:[%s279 + $0x88] sm:$0xff] %v811
        %844 = vst [vmem:[%s279 + $0x90] sm:$0xff] %v812
        %845 = vst [vmem:[%s279 + $0x98] sm:$0xff] %v813
        %846 = vst [vmem:[%s279 + $0xa0] sm:$0xff] %v814
        %847 = vst [vmem:[%s279 + $0xa8] sm:$0xff] %v815
        %848 = vst [vmem:[%s279 + $0xb0] sm:$0xff] %v816
        %849 = vst [vmem:[%s279 + $0xb8] sm:$0xff] %v817
        %850 = vst [vmem:[%s279 + $0xc0] sm:$0xff] %v818
        %851 = vst [vmem:[%s279 + $0xc8] sm:$0xff] %v819
        %852 = vst [vmem:[%s279 + $0xd0] sm:$0xff] %v820
        %853 = vst [vmem:[%s279 + $0xd8] sm:$0xff] %v821
        %854 = vst [vmem:[%s279 + $0xe0] sm:$0xff] %v822
        %855 = vst [vmem:[%s279 + $0xe8] sm:$0xff] %v823
        %856 = vst [vmem:[%s279 + $0xf0] sm:$0xff] %v824
        %857 = vst [vmem:[%s279 + $0xf8] sm:$0xff] %v825
        %s858 = sand.u32 %s129, 1
        %s859 = scalar_lea.sflag [#allocation4], %s858
        %s860 = sand.u32 %s129, 1
        %s861 = smul.addr %s860, 256
        %s862 = scalar_lea.vmem [#allocation8], %s861
        // Predicated region
        $region49: #{tpu_custom_call.1} parent=35 // pred_check
          %p863 = pneg %p139
        $region50: #{tpu_custom_call.1} parent=35 // pred_check_branch
          %865 = sbr.rel (%p863) target = $region52
        $region51: #{tpu_custom_call.1} parent=35 // pred_region
          %s866 = smul.u32 2, %s22
          %s868 = ssub.s32 4096, 4096
          %869 = vsyncadd %s859, %s868
          %s870 = smul.addr %s866, 128
          %s871 = scalar_lea.hbm %s4, %s870
          %s872 = sshll.u32 %s862, 4
          %s873 = int_to_ptr.vmem [resolvable:$true] %s872
          %878 = dma.vmem_to_hbm [thread:$0]  %s873, 4096, %s871, %s859, 256, 512, 16
        $region52: #{tpu_custom_call.1} parent=35 // pred_fallthru
          _
      $region36: #{tpu_custom_call.1} parent=5 // pred_fallthru
        _
      %p879 = scmp.le.s32.totalorder 2, %s17
      // Predicated region
      $region53: #{tpu_custom_call.1} parent=5 // pred_check
        %p880 = pneg %p879
      $region54: #{tpu_custom_call.1} parent=5 // pred_check_branch
        %882 = sbr.rel (%p880) target = $region56
      $region55: #{tpu_custom_call.1} parent=5 // pred_region
        %s883 = ssub.s32 %s17, 2
        // Predicated region
        $region57: #{tpu_custom_call.1} parent=55 // pred_check
          %p884 = pneg %p145
        $region58: #{tpu_custom_call.1} parent=55 // pred_check_branch
          %886 = sbr.rel (%p884) target = $region60
        $region59: #{tpu_custom_call.1} parent=55 // pred_region
          %s887 = sand.u32 %s130, 1
          %s888 = scalar_lea.sflag [#allocation4], %s887
          %s889 = sand.u32 %s130, 1
          %s890 = smul.addr %s889, 256
          %s891 = scalar_lea.vmem [#allocation8], %s890
          %892 = dma.done %s888, 4096
        $region60: #{tpu_custom_call.1} parent=55 // pred_fallthru
          _
      $region56: #{tpu_custom_call.1} parent=5 // pred_fallthru
        _
    $region6: #{tpu_custom_call.1} parent=1 // loop_footer
      %s21 = sadd.s32 1, %s17
    $region7: #{tpu_custom_call.1} parent=1 // loop_footer_branch
      %16 = sbr.rel target = $region3
    $region8: #{tpu_custom_call.1} parent=1 // loop_exit
      _
    %893 = vsyncpa [#allocation3], 1
    %s894 = scalar_lea.sflag [#allocation3], 1
    %895 = vsyncpa %s894, 1
    %896 = vsyncpa [#allocation6], 1
    %s897 = scalar_lea.sflag [#allocation6], 1
    %898 = vsyncpa %s897, 1
    %899 = vsyncpa [#allocation4], 1
    %s900 = scalar_lea.sflag [#allocation4], 1
    %901 = vsyncpa %s900, 1

</llo_original>
